<compile_context>
chip_gen: v7x
topology: tpu7x:2x2x1
jax: 0.10.0
libtpu: 0.0.40
codegen_flags: <defaults>
</compile_context>

<pallas_src>
import functools

import jax
import jax.numpy as jnp
from jax.experimental import pallas as pl
from jax.experimental.pallas import tpu as pltpu

_LANES = 128
_SUBLANES = 8
_MAX_BLOCK_ROWS = 4096   # (4096, 128) f32 = 2 MiB per input per pipeline buffer
_CHUNK_ROWS = 512        # in-kernel compute granularity (256 KiB f32)
# Pad value for x: finite in f16/bf16/f32; exp(-1e4) underflows to 0 and
# (-x)*0 == 0, so padded elements contribute exactly 0 to the loss sum.
_X_PAD = -1.0e4


def _elem_loss(x, t):
    # per-element: -x*target + max(x, 0) + log(1 + exp(-|x|))
    return -x * t + jnp.maximum(x, 0.0) + jnp.log(1.0 + jnp.exp(-jnp.abs(x)))


def _block_partial(x_ref, t_ref, *, n_chunks, chunk_rows, masked, row0, n_valid_rows):
    """Sum of element losses over the first n_chunks*chunk_rows rows of the
    current block, folded into an (8, 128) f32 partial."""

    def chunk_sum(start, xs, ts):
        xs = xs.astype(jnp.float32)
        ts = ts.astype(jnp.float32)
        elem = _elem_loss(xs, ts)
        if masked:
            # Row-only mask (no flat element index -> no int32 overflow).
            rows = jax.lax.broadcasted_iota(jnp.int32, elem.shape, 0) + (row0 + start)
            elem = jnp.where(rows < n_valid_rows, elem, 0.0)
        # Fold (chunk_rows, 128) -> (8, 128): pure VPU vreg adds, no xlane work.
        return jnp.sum(elem.reshape(chunk_rows // _SUBLANES, _SUBLANES, _LANES), axis=0)

    if n_chunks == 1:
        return chunk_sum(0, x_ref[pl.ds(0, chunk_rows), :], t_ref[pl.ds(0, chunk_rows), :])

    def body(ci, acc):
        start = pl.multiple_of(ci * chunk_rows, chunk_rows)
        return acc + chunk_sum(
            start,
            x_ref[pl.ds(start, chunk_rows), :],
            t_ref[pl.ds(start, chunk_rows), :],
        )

    return jax.lax.fori_loop(
        0, n_chunks, body, jnp.zeros((_SUBLANES, _LANES), jnp.float32)
    )


def _sce_kernel(x_ref, t_ref, o_ref, *, n_outer, n_inner, n_blocks, block_rows,
                chunk_rows, slab_rows):
    c = pl.program_id(0)
    k = pl.program_id(1)

    @pl.when(k == 0)
    def _():
        o_ref[...] = jnp.zeros_like(o_ref)

    g = c * n_inner + k                              # global block index
    last_is_ragged = (slab_rows % block_rows) != 0   # static
    has_phantom = (n_outer * n_inner) > n_blocks     # static
    n_full_blocks = n_blocks - 1 if last_is_ragged else n_blocks
    full_chunks = block_rows // chunk_rows

    def accumulate(n_chunks, masked, row0):
        o_ref[...] += _block_partial(
            x_ref, t_ref, n_chunks=n_chunks, chunk_rows=chunk_rows,
            masked=masked, row0=row0, n_valid_rows=slab_rows)

    if not last_is_ragged and not has_phantom:
        # Steady state everywhere: no masks, no branches.
        accumulate(full_chunks, False, 0)
    else:
        if n_full_blocks > 0:
            @pl.when(g < n_full_blocks)          # fully in-bounds blocks: mask-free
            def _():
                accumulate(full_chunks, False, 0)
        if last_is_ragged:
            last_rows = slab_rows - (n_blocks - 1) * block_rows
            last_chunks = -(-last_rows // chunk_rows)
            @pl.when(g == n_blocks - 1)          # only the last real block pays the mask
            def _():
                accumulate(last_chunks, True, (n_blocks - 1) * block_rows)
        # g >= n_blocks: phantom step of the 2-way outer split -> nothing to do.


def sigmoid_cross_entropy_loss(x, target):
    """Pallas implementation of SigmoidCrossEntropyLoss.forward. Returns scalar f32."""
    assert x.shape == target.shape
    total_n = x.size
    n_rows = -(-total_n // _LANES)

    if n_rows >= _MAX_BLOCK_ROWS:
        block_rows = _MAX_BLOCK_ROWS
        chunk_rows = _CHUNK_ROWS
        slab_rows = n_rows                       # ragged last block handled in-kernel
    elif n_rows > _CHUNK_ROWS:
        chunk_rows = _CHUNK_ROWS
        block_rows = -(-n_rows // _CHUNK_ROWS) * _CHUNK_ROWS
        slab_rows = block_rows                   # pad rows; single block, no mask
    else:
        block_rows = -(-n_rows // _SUBLANES) * _SUBLANES
        chunk_rows = block_rows
        slab_rows = block_rows

    padded_n = slab_rows * _LANES
    pad = padded_n - total_n

    def to_slab(a, pad_value):
        flat = jnp.ravel(a)                      # free reshape for contiguous inputs
        if pad:
            # Only the ragged / small path materializes a padded copy; padded
            # x elements (-1e4) contribute exactly 0 to the loss sum.
            flat = jnp.pad(flat, (0, pad), constant_values=pad_value)
        return flat.reshape(slab_rows, _LANES)

    x2 = to_slab(x, _X_PAD)
    t2 = to_slab(target, 0)

    n_blocks = -(-slab_rows // block_rows)
    # Two-way outer "parallel" split whenever possible so both TensorCores of a
    # v7x megacore stream disjoint halves (no-op on single-TC v5e/v6e).
    n_outer = 2 if n_blocks >= 2 else 1
    n_inner = -(-n_blocks // n_outer)
    has_phantom = n_outer * n_inner > n_blocks

    if has_phantom:
        # Clamp the phantom step's block index so its DMA stays in bounds;
        # its compute is skipped in-kernel via pl.when.
        def in_map(c, k):
            return (jnp.minimum(c * n_inner + k, n_blocks - 1), 0)
    else:
        def in_map(c, k):
            return (c * n_inner + k, 0)

    kernel = functools.partial(
        _sce_kernel, n_outer=n_outer, n_inner=n_inner, n_blocks=n_blocks,
        block_rows=block_rows, chunk_rows=chunk_rows, slab_rows=slab_rows)

    bytes_accessed = (x2.size * x2.dtype.itemsize + t2.size * t2.dtype.itemsize
                      + n_outer * _SUBLANES * _LANES * 4)
    cost = pl.CostEstimate(flops=6 * total_n, transcendentals=2 * total_n,
                           bytes_accessed=bytes_accessed)

    partials = pl.pallas_call(
        kernel,
        out_shape=jax.ShapeDtypeStruct((n_outer * _SUBLANES, _LANES), jnp.float32),
        grid_spec=pltpu.PrefetchScalarGridSpec(
            num_scalar_prefetch=0,
            grid=(n_outer, n_inner),
            in_specs=[
                pl.BlockSpec((block_rows, _LANES), in_map),
                pl.BlockSpec((block_rows, _LANES), in_map),
            ],
            out_specs=pl.BlockSpec((_SUBLANES, _LANES), lambda c, k: (c, 0)),
        ),
        compiler_params=pltpu.CompilerParams(
            dimension_semantics=("parallel", "arbitrary"),
            vmem_limit_bytes=32 * 1024 * 1024,
        ),
        cost_estimate=cost,
    )(x2, t2)

    # Tiny final reduction (at most 2 KiB) + mean + abs in the wrapper.
    return jnp.abs(jnp.sum(partials) / jnp.float32(total_n))


def _reference(x, target):
    x = x.astype(jnp.float32)
    target = target.astype(jnp.float32)
    tmp = 1.0 + jnp.exp(-jnp.abs(x))
    return jnp.abs(jnp.mean(-x * target + jnp.maximum(x, 0.0) + jnp.log(tmp)))


if __name__ == "__main__":
    key = jax.random.PRNGKey(0)
    kx, kt = jax.random.split(key)
    # NCHW, small synthetic shapes
    x = jax.random.normal(kx, (2, 4, 16, 16), dtype=jnp.float32)
    target = (jax.random.uniform(kt, (2, 4, 16, 16)) > 0.5).astype(jnp.float32)

    out = sigmoid_cross_entropy_loss(x, target)
    out = jax.block_until_ready(out)

    ref = _reference(x, target)
    assert jnp.allclose(out, ref, rtol=1e-4, atol=1e-5), (out, ref)
    print("KERNEL_OK")
</pallas_src>

<mosaic_0001>
module attributes {stable_mosaic.version = 11 : i64} {
  func.func @_sce_kernel(%arg0: i32, %arg1: i32, %arg2: memref<16x128xf32, #tpu.memory_space<vmem>>, %arg3: memref<16x128xf32, #tpu.memory_space<vmem>>, %arg4: memref<8x128xf32, #tpu.memory_space<vmem>>) attributes {dimension_semantics = [#tpu.dimension_semantics<parallel>, #tpu.dimension_semantics<arbitrary>], iteration_bounds = array<i64: 1, 1>, scalar_prefetch = 0 : i64, scratch_operands = 0 : i64, tpu.core_type = #tpu.core_type<tc>, window_params = [{transform_indices = @transform_0, window_bounds = array<i64: 16, 128>}, {transform_indices = @transform_1, window_bounds = array<i64: 16, 128>}, {transform_indices = @transform_2, window_bounds = array<i64: 8, 128>}]} {
    %c0_i32 = arith.constant 0 : i32
    %0 = arith.cmpi eq, %arg1, %c0_i32 : i32
    %1 = arith.extui %0 : i1 to i32
    %c0_i32_0 = arith.constant 0 : i32
    %2 = arith.cmpi ne, %1, %c0_i32_0 : i32
    scf.if %2 {
      %cst_12 = arith.constant 0.000000e+00 : f32
      %24 = vector.broadcast %cst_12 : f32 to vector<8x128xf32>
      %c0_13 = arith.constant 0 : index
      %c0_14 = arith.constant 0 : index
      %25 = vector.load %arg4[%c0_13, %c0_14] : memref<8x128xf32, #tpu.memory_space<vmem>>, vector<8x128xf32>
      tpu.vector_store %arg4[%c0_13, %c0_14], %24 {strides = array<i32>} : memref<8x128xf32, #tpu.memory_space<vmem>>, vector<8x128xf32>,
    } else {
    }
    %c0 = arith.constant 0 : index
    %c0_1 = arith.constant 0 : index
    %3 = vector.load %arg4[%c0, %c0_1] : memref<8x128xf32, #tpu.memory_space<vmem>>, vector<8x128xf32>
    %c0_2 = arith.constant 0 : index
    %c0_3 = arith.constant 0 : index
    %4 = vector.load %arg2[%c0_2, %c0_3] : memref<16x128xf32, #tpu.memory_space<vmem>>, vector<16x128xf32>
    %c0_4 = arith.constant 0 : index
    %c0_5 = arith.constant 0 : index
    %5 = vector.load %arg3[%c0_4, %c0_5] : memref<16x128xf32, #tpu.memory_space<vmem>>, vector<16x128xf32>
    %cst = arith.constant 0.000000e+00 : f32
    %6 = vector.broadcast %cst : f32 to vector<16x128xf32>
    %7 = arith.subf %6, %4 : vector<16x128xf32>
    %8 = arith.mulf %7, %5 : vector<16x128xf32>
    %cst_6 = arith.constant 0.000000e+00 : f32
    %9 = vector.broadcast %cst_6 : f32 to vector<16x128xf32>
    %10 = arith.maximumf %4, %9 : vector<16x128xf32>
    %11 = arith.addf %8, %10 : vector<16x128xf32>
    %12 = math.absf %4 : vector<16x128xf32>
    %cst_7 = arith.constant 0.000000e+00 : f32
    %13 = vector.broadcast %cst_7 : f32 to vector<16x128xf32>
    %14 = arith.subf %13, %12 : vector<16x128xf32>
    %15 = math.exp %14 : vector<16x128xf32>
    %cst_8 = arith.constant 1.000000e+00 : f32
    %16 = vector.broadcast %cst_8 : f32 to vector<16x128xf32>
    %17 = arith.addf %16, %15 : vector<16x128xf32>
    %18 = math.log %17 : vector<16x128xf32>
    %19 = arith.addf %11, %18 : vector<16x128xf32>
    %20 = vector.shape_cast %19 : vector<16x128xf32> to vector<2x8x128xf32>
    %cst_9 = arith.constant dense<0.000000e+00> : vector<8x128xf32>
    %21 = vector.multi_reduction <add>, %20, %cst_9 [0] : vector<2x8x128xf32> to vector<8x128xf32>
    %22 = arith.addf %3, %21 : vector<8x128xf32>
    %c0_10 = arith.constant 0 : index
    %c0_11 = arith.constant 0 : index
    %23 = vector.load %arg4[%c0_10, %c0_11] : memref<8x128xf32, #tpu.memory_space<vmem>>, vector<8x128xf32>
    tpu.vector_store %arg4[%c0_10, %c0_11], %22 {strides = array<i32>} : memref<8x128xf32, #tpu.memory_space<vmem>>, vector<8x128xf32>,
    return
  }
  func.func @transform_0(%arg0: i32, %arg1: i32) -> (i32, i32) {
    %c1_i32 = arith.constant 1 : i32
    %0 = arith.muli %arg0, %c1_i32 : i32
    %1 = arith.addi %0, %arg1 : i32
    %c0_i32 = arith.constant 0 : i32
    %c0_i32_0 = arith.constant 0 : i32
    return %1, %c0_i32 : i32, i32
  }
  func.func @transform_1(%arg0: i32, %arg1: i32) -> (i32, i32) {
    %c1_i32 = arith.constant 1 : i32
    %0 = arith.muli %arg0, %c1_i32 : i32
    %1 = arith.addi %0, %arg1 : i32
    %c0_i32 = arith.constant 0 : i32
    %c0_i32_0 = arith.constant 0 : i32
    return %1, %c0_i32 : i32, i32
  }
  func.func @transform_2(%arg0: i32, %arg1: i32) -> (i32, i32) {
    %c0_i32 = arith.constant 0 : i32
    %c0_i32_0 = arith.constant 0 : i32
    return %arg0, %c0_i32 : i32, i32
  }
}

</mosaic_0001>

<llo_original>
// kernel: tpu_custom_call.1
$region0: #{tpu_custom_call.1}
  #allocation0 [shape = 'u32[]', space=smem, size = 0x4, offset = 0x4, fixed_abs, tag = 'smem constant byte address 0x4 - core index']
  #allocation1 [shape = 'u32[144,128]{1,0:T(1,128)}', space=vmem, size = 0x12000, scoped, tag = 'internal scratch']
  %s0 = inlined_call_operand.hbm [shape: f32[16,128], index: 0, kind: input, shape index: {}]
  %s1 = inlined_call_operand.hbm [shape: f32[16,128], index: 1, kind: input, shape index: {}]
  %s2 = inlined_call_operand.hbm [shape: f32[8,128], index: 2, kind: output, shape index: {}]
  %s3 = sld [smem:[#allocation0]]
  $region30: #{tpu_custom_call.1} parent=0
    _
  %s5 = ssub.s32 1, %s3
  %s6 = scalar_select 0, %s5, %s3
  $region1: #{tpu_custom_call.1} parent=0
    #allocation2 [shape = 'u8[8192]{0}', space=vmem, size = 0x2000, scoped, tag = 'input window, operand 0, single buffered']
    #allocation3 [shape = 's32[1]{0}', space=sflag, size = 0x4, scoped, tag = 'scoped memory for tpu_custom_call.1']
    #allocation4 [shape = 's32[1]{0}', space=sflag, size = 0x4, scoped, tag = 'scoped memory for tpu_custom_call.1']
    #allocation5 [shape = 'u8[8192]{0}', space=vmem, size = 0x2000, scoped, tag = 'input window, operand 1, single buffered']
    #allocation6 [shape = 's32[1]{0}', space=sflag, size = 0x4, scoped, tag = 'scoped memory for tpu_custom_call.1']
    #allocation7 [shape = 'u8[4096]{0}', space=vmem, size = 0x1000, scoped, tag = 'output window, operand 0, single buffered']
    %7 = vsyncpa [#allocation3], 0
    %8 = vsyncpa [#allocation6], 0
    %9 = vsyncpa [#allocation4], 0
    // Predicated region
    $region2: #{tpu_custom_call.1} parent=1 // pred_check
      _
    $region3: #{tpu_custom_call.1} parent=1 // pred_check_branch
      %11 = sbr.rel (0) target = $region5
    $region4: #{tpu_custom_call.1} parent=1 // pred_region
      %s12 = sadd.s32 0, 0
      %s13 = smul.u32 2, %s12
      %s15 = ssub.s32 256, 256
      %16 = vsyncadd [#allocation3], %s15
      %s17 = smul.addr %s13, 128
      %s18 = scalar_lea.hbm %s0, %s17
      %s19 = sshll.u32 [#allocation2], 4
      %s20 = int_to_ptr.vmem [resolvable:$true] %s19
      %25 = dma.hbm_to_vmem [thread:$0]  %s18, 256, %s20, [#allocation3], 128, 128, 8
    $region5: #{tpu_custom_call.1} parent=1 // pred_fallthru
      _
    // Predicated region
    $region6: #{tpu_custom_call.1} parent=1 // pred_check
      _
    $region7: #{tpu_custom_call.1} parent=1 // pred_check_branch
      %27 = sbr.rel (0) target = $region9
    $region8: #{tpu_custom_call.1} parent=1 // pred_region
      %s28 = sadd.s32 0, 0
      %s29 = smul.u32 2, %s28
      %s31 = ssub.s32 256, 256
      %32 = vsyncadd [#allocation6], %s31
      %s33 = smul.addr %s29, 128
      %s34 = scalar_lea.hbm %s1, %s33
      %s35 = sshll.u32 [#allocation5], 4
      %s36 = int_to_ptr.vmem [resolvable:$true] %s35
      %41 = dma.hbm_to_vmem [thread:$0]  %s34, 256, %s36, [#allocation6], 128, 128, 8
    $region9: #{tpu_custom_call.1} parent=1 // pred_fallthru
      _
    // Predicated region
    $region10: #{tpu_custom_call.1} parent=1 // pred_check
      _
    $region11: #{tpu_custom_call.1} parent=1 // pred_check_branch
      %43 = sbr.rel (0) target = $region13
    $region12: #{tpu_custom_call.1} parent=1 // pred_region
      %44 = dma.done [#allocation3], 256
    $region13: #{tpu_custom_call.1} parent=1 // pred_fallthru
      _
    // Predicated region
    $region14: #{tpu_custom_call.1} parent=1 // pred_check
      _
    $region15: #{tpu_custom_call.1} parent=1 // pred_check_branch
      %46 = sbr.rel (0) target = $region17
    $region16: #{tpu_custom_call.1} parent=1 // pred_region
      %47 = dma.done [#allocation6], 256
    $region17: #{tpu_custom_call.1} parent=1 // pred_fallthru
      _
    %s48 = sadd.s32 0, 0
    %s49 = smul.u32 2, %s48
    %s50 = sadd.s32 0, 0
    %s51 = smul.u32 2, %s50
    %p52 = scmp.eq.s32.totalorder 0, 0
    // Predicated region
    $region18: #{tpu_custom_call.1} parent=1 // pred_check
      %p53 = pneg %p52
    $region19: #{tpu_custom_call.1} parent=1 // pred_check_branch
      %55 = sbr.rel (%p53) target = $region21
    $region20: #{tpu_custom_call.1} parent=1 // pred_region
      %56 = vst [vmem:[#allocation7] sm:$0xff] 0.0
    $region21: #{tpu_custom_call.1} parent=1 // pred_fallthru
      _
    %v57 = vld [vmem:[#allocation7] sm:$0xff]
    %v58 = vld [vmem:[#allocation2] sm:$0xff]
    %v59 = vld [vmem:[#allocation2 + $0x8] sm:$0xff]
    %v60 = vld [vmem:[#allocation5] sm:$0xff]
    %v61 = vld [vmem:[#allocation5 + $0x8] sm:$0xff]
    %v62 = vsub.f32 0.0, %v58
    %v63 = vsub.f32 0.0, %v59
    %v64 = vmul.f32 %v62, %v60
    %v65 = vmul.f32 %v63, %v61
    %v66 = vmax.f32 %v58, 0.0
    %v67 = vmax.f32 %v59, 0.0
    %v68 = vadd.f32 %v64, %v66
    %v69 = vadd.f32 %v65, %v67
    %v70 = vand.u32 2147483647, %v58
    %v71 = vand.u32 2147483647, %v59
    %v72 = vsub.f32 0.0, %v70
    %v73 = vsub.f32 0.0, %v71
    %v74 = vmul.f32 %v72, 1.442695
    %v75 = vpow.pop %v74
    %v76 = vmul.f32 %v73, 1.442695
    %v77 = vpow.pop %v76
    %v78 = vadd.f32 %v75, 1.0
    %v79 = vadd.f32 %v77, 1.0
    %v80 = vlog2.pop %v78
    %v81 = vmul.f32 %v80, 0.6931472
    %v82 = vlog2.pop %v79
    %v83 = vmul.f32 %v82, 0.6931472
    %v84 = vadd.f32 %v68, %v81
    %v85 = vadd.f32 %v69, %v83
    %v86 = vadd.f32 %v84, %v85
    %v87 = vadd.f32 %v57, %v86
    %88 = vst [vmem:[#allocation7] sm:$0xff] %v87
    // Predicated region
    $region22: #{tpu_custom_call.1} parent=1 // pred_check
      _
    $region23: #{tpu_custom_call.1} parent=1 // pred_check_branch
      %90 = sbr.rel (0) target = $region25
    $region24: #{tpu_custom_call.1} parent=1 // pred_region
      %s92 = ssub.s32 128, 128
      %93 = vsyncadd [#allocation4], %s92
      %s95 = sshll.u32 [#allocation7], 4
      %s96 = int_to_ptr.vmem [resolvable:$true] %s95
      %98 = dma.vmem_to_hbm [thread:$0]  %s96, 128, %s2, [#allocation4]
    $region25: #{tpu_custom_call.1} parent=1 // pred_fallthru
      _
    // Predicated region
    $region26: #{tpu_custom_call.1} parent=1 // pred_check
      _
    $region27: #{tpu_custom_call.1} parent=1 // pred_check_branch
      %100 = sbr.rel (0) target = $region29
    $region28: #{tpu_custom_call.1} parent=1 // pred_region
      %101 = dma.done [#allocation4], 128
    $region29: #{tpu_custom_call.1} parent=1 // pred_fallthru
      _
    %102 = vsyncpa [#allocation3], 1
    %103 = vsyncpa [#allocation6], 1
    %104 = vsyncpa [#allocation4], 1

</llo_original>
